<compile_context>
chip_gen: v6e
topology: v6e:2x2x1
jax: 0.10.0
libtpu: 0.0.40
codegen_flags: <defaults>
</compile_context>

<pallas_src>
import functools
import math

import jax
import jax.numpy as jnp
from jax.experimental import pallas as pl
from jax.experimental.pallas import tpu as pltpu  # noqa: F401  (kept for parity / future use)

# The module's self.h0 / self.c0 are constant zeros on every forward(); the kernel
# is algebraically specialized to that (no h0 @ W_hh, no f-gate, no f*c0).
# TODO(synk): there is no runtime check that the caller's state really is zero.
ASSUME_ZERO_STATE = True


def _policy_both_kernel(n_hidden, x_ref, wig_ref, wlin_ref, mean_ref):
    """Single fused launch: both parameter branches -> [mean | mean_old].

    x_ref    : (B, n_input+1)        last column is the constant 1 (bias carrier)
    wig_ref  : (n_input+1, 4H)       columns = [i_cur | i_old | g_cur | g_old],
                                     last row = fused gate biases (b_ih + b_hh)
    wlin_ref : (2H+1, 2*n_output)    rows 0:H  = [W_lin_cur | 0]
                                     rows H:2H = [0 | W_lin_old]
                                     row  2H   = [b_lin_cur | b_lin_old]
    mean_ref : (B, 2*n_output)       [action_mean | action_mean_old]
    """
    H2 = 2 * n_hidden

    # Zero initial state => no h0 @ W_hh term; bias folded into the matmul.
    gates = jnp.dot(x_ref[...], wig_ref[...],
                    preferred_element_type=jnp.float32)          # (B, 4H) = (B, 128)

    # c1 = sigmoid(i) * tanh(g)   (f * c0 == 0);  both branches at once.
    c1 = jax.nn.sigmoid(gates[:, :H2]) * jnp.tanh(gates[:, H2:])  # (B, 2H): [cur | old]

    w_blk = wlin_ref[:H2, :]            # (2H, 2*n_out)  block-diagonal linear
    b_row = wlin_ref[H2:H2 + 1, :]      # (1, 2*n_out)   fused linear bias
    y = jnp.dot(c1, w_blk, preferred_element_type=jnp.float32) + b_row

    mean_ref[...] = jnp.where(y > 0, y, 0.01 * y)                # LeakyReLU(0.01)


def fuse_branch_params(params, params_old, n_hidden, n_output, batch):
    """One-time wrapper-side layout work.

    * Slices the i/g gate columns of both parameter sets and concatenates them
      into a single lane-dense (n_input+1, 4H) gate operand (bias row folded in).
    * Builds the block-diagonal (2H+1, 2*n_output) linear operand (bias row folded).
    * Precomputes the parameter-only outputs log_std / std (exp + broadcast) so the
      per-call path contains nothing but the single pallas_call.
    """
    H = n_hidden

    def gate_cols(p, lo, hi):
        return p["w_ih_t"][:, lo:hi], p["b_lstm"][:, lo:hi]

    # PyTorch LSTMCell gate order along 4H is [i, f, g, o]; keep i (0:H) and g (2H:3H).
    wi_c, bi_c = gate_cols(params, 0, H)
    wg_c, bg_c = gate_cols(params, 2 * H, 3 * H)
    wi_o, bi_o = gate_cols(params_old, 0, H)
    wg_o, bg_o = gate_cols(params_old, 2 * H, 3 * H)

    # Fused gate weight, columns [i_cur | i_old | g_cur | g_old]; bias as last row.
    w_gate = jnp.concatenate([wi_c, wi_o, wg_c, wg_o], axis=1)        # (n_in, 4H)
    b_gate = jnp.concatenate([bi_c, bi_o, bg_c, bg_o], axis=1)        # (1, 4H)
    w_ig_aug = jnp.concatenate([w_gate, b_gate], axis=0)              # (n_in+1, 4H)

    # Block-diagonal linear + bias row.
    z = jnp.zeros((H, n_output), jnp.float32)
    w_lin_blk = jnp.concatenate(
        [jnp.concatenate([params["w_lin_t"], z], axis=1),
         jnp.concatenate([z, params_old["w_lin_t"]], axis=1)], axis=0)  # (2H, 2*n_out)
    b_lin_row = jnp.concatenate([params["b_lin"], params_old["b_lin"]], axis=1)
    w_lin_aug = jnp.concatenate([w_lin_blk, b_lin_row], axis=0)         # (2H+1, 2*n_out)

    # Parameter-only outputs, hoisted out of the per-step critical path.
    log_std = jnp.broadcast_to(params["action_log_std"], (batch, n_output))
    log_std_old = jnp.broadcast_to(params_old["action_log_std"], (batch, n_output))

    return {
        "w_ig_aug": w_ig_aug,                 # (n_input+1, 4H)
        "w_lin_aug": w_lin_aug,               # (2H+1, 2*n_output)
        "log_std": log_std, "std": jnp.exp(log_std),
        "log_std_old": log_std_old, "std_old": jnp.exp(log_std_old),
        "batch": batch, "n_hidden": H, "n_output": n_output,
    }


def policy_net_forward(x, fused):
    """Both PolicyNet branches (current + old params) in ONE grid-less pallas_call.

    Returns (mean, log_std, std, mean_old, log_std_old, std_old)."""
    assert ASSUME_ZERO_STATE, "kernel is specialized to the module's zero initial state"
    B, n_input = x.shape
    H = fused["n_hidden"]
    n_output = fused["n_output"]
    assert B == fused["batch"], "re-run fuse_branch_params for this batch size"

    # Constant-1 column carries the fused gate bias through the matmul.
    x_aug = jnp.concatenate([x, jnp.ones((B, 1), x.dtype)], axis=1)   # (B, n_in+1)

    flops = 2 * B * (n_input + 1) * (4 * H) + 2 * B * (2 * H) * (2 * n_output)
    bytes_accessed = 4 * (B * (n_input + 1)
                          + (n_input + 1) * 4 * H
                          + (2 * H + 1) * 2 * n_output
                          + B * 2 * n_output)

    mean_both = pl.pallas_call(
        functools.partial(_policy_both_kernel, H),
        out_shape=jax.ShapeDtypeStruct((B, 2 * n_output), jnp.float32),
        # No grid: whole (tiny) operands live in VMEM; one launch, one output DMA.
        cost_estimate=pl.CostEstimate(
            flops=flops,
            transcendentals=4 * H * B,          # 2H sigmoids + 2H tanhs per row
            bytes_accessed=bytes_accessed),
    )(x_aug, fused["w_ig_aug"], fused["w_lin_aug"])

    mean = mean_both[:, :n_output]
    mean_old = mean_both[:, n_output:]
    return (mean, fused["log_std"], fused["std"],
            mean_old, fused["log_std_old"], fused["std_old"])


def init_params(key, n_input, n_hidden, n_output):
    """Deterministic init matching PyTorch LSTMCell / Linear default ranges."""
    k_lstm = 1.0 / math.sqrt(n_hidden)
    k_lin = 1.0 / math.sqrt(n_hidden)
    keys = jax.random.split(key, 6)

    w_ih = jax.random.uniform(keys[0], (4 * n_hidden, n_input), jnp.float32, -k_lstm, k_lstm)
    w_hh = jax.random.uniform(keys[1], (4 * n_hidden, n_hidden), jnp.float32, -k_lstm, k_lstm)
    b_ih = jax.random.uniform(keys[2], (4 * n_hidden,), jnp.float32, -k_lstm, k_lstm)
    b_hh = jax.random.uniform(keys[3], (4 * n_hidden,), jnp.float32, -k_lstm, k_lstm)
    w_lin = jax.random.uniform(keys[4], (n_output, n_hidden), jnp.float32, -k_lin, k_lin)
    b_lin = jax.random.uniform(keys[5], (n_output,), jnp.float32, -k_lin, k_lin)

    return {
        # pre-transposed to (in, out) so the kernel does x @ W
        "w_ih_t": jnp.transpose(w_ih),                       # (n_input, 4H)
        "w_hh_t": jnp.transpose(w_hh),                       # (n_hidden, 4H)  (reference only)
        "b_lstm": (b_ih + b_hh).reshape(1, 4 * n_hidden),    # (1, 4H)
        "w_lin_t": jnp.transpose(w_lin),                     # (n_hidden, n_output)
        "b_lin": b_lin.reshape(1, n_output),                 # (1, n_output)
        "action_log_std": jnp.zeros((1, n_output), jnp.float32),
    }


def _reference_forward(x, p, n_hidden):
    """Plain-JAX reference with the FULL LSTMCell math (validates the zero-state
    simplification used in the kernel).  h0/c0 are the module's constant zeros."""
    H = n_hidden
    B = x.shape[0]
    h0 = jnp.zeros((B, H), jnp.float32)
    c0 = jnp.zeros((B, H), jnp.float32)
    gates = x @ p["w_ih_t"] + h0 @ p["w_hh_t"] + p["b_lstm"]
    i = jax.nn.sigmoid(gates[:, 0 * H:1 * H])
    f = jax.nn.sigmoid(gates[:, 1 * H:2 * H])
    g = jnp.tanh(gates[:, 2 * H:3 * H])
    # o gate only feeds the stored hidden state h1 = o * tanh(c1); never returned.
    c1 = f * c0 + i * g
    y = c1 @ p["w_lin_t"] + p["b_lin"]
    mean = jnp.where(y > 0, y, 0.01 * y)
    log_std = jnp.broadcast_to(p["action_log_std"], mean.shape)
    return mean, log_std, jnp.exp(log_std)


if __name__ == "__main__":
    # Module config: n_input=16, n_hidden=32, n_output=8.
    n_input, n_hidden, n_output = 16, 32, 8

    key = jax.random.PRNGKey(0)
    k_x, k_p, k_xb = jax.random.split(key, 3)

    params = init_params(k_p, n_input, n_hidden, n_output)
    # backup(): deepcopy of the modules at __init__ time -> identical values.
    # (In real PPO usage this must be a genuine snapshot of diverged params.)
    params_old = jax.tree_util.tree_map(lambda a: a, params)

    # ---- module-faithful case: batch == 1 (self.h0/self.c0 are (1, n_hidden)) ----
    batch = 1
    x = jax.random.normal(k_x, (batch, n_input), jnp.float32)
    fused = fuse_branch_params(params, params_old, n_hidden, n_output, batch)

    outs = policy_net_forward(x, fused)
    jax.block_until_ready(outs)
    mean, log_std, std, mean_old, log_std_old, std_old = outs

    ref = _reference_forward(x, params, n_hidden)
    for got, want in zip((mean, log_std, std), ref):
        assert got.shape == (batch, n_output)
        assert jnp.allclose(got, want, atol=1e-5, rtol=1e-4)
    ref_old = _reference_forward(x, params_old, n_hidden)
    for got, want in zip((mean_old, log_std_old, std_old), ref_old):
        assert got.shape == (batch, n_output)
        assert jnp.allclose(got, want, atol=1e-5, rtol=1e-4)

    # ---- batched case (perf recommendation): amortize launch overhead over B rows ----
    batch_b = 8
    xb = jax.random.normal(k_xb, (batch_b, n_input), jnp.float32)
    fused_b = fuse_branch_params(params, params_old, n_hidden, n_output, batch_b)
    outs_b = policy_net_forward(xb, fused_b)
    jax.block_until_ready(outs_b)
    ref_b = _reference_forward(xb, params, n_hidden)
    assert jnp.allclose(outs_b[0], ref_b[0], atol=1e-5, rtol=1e-4)   # mean
    assert jnp.allclose(outs_b[3], ref_b[0], atol=1e-5, rtol=1e-4)   # mean_old (same params)

    print("KERNEL_OK")
</pallas_src>

<mosaic_0001>
module attributes {stable_mosaic.version = 11 : i64} {
  func.func @_policy_both_kernel(%arg0: memref<1x17xf32, #tpu.memory_space<vmem>>, %arg1: memref<17x128xf32, #tpu.memory_space<vmem>>, %arg2: memref<65x16xf32, #tpu.memory_space<vmem>>, %arg3: memref<1x16xf32, #tpu.memory_space<vmem>>) attributes {dimension_semantics = [], scalar_prefetch = 0 : i64, scratch_operands = 0 : i64, tpu.core_type = #tpu.core_type<tc>} {
    %c0 = arith.constant 0 : index
    %c0_0 = arith.constant 0 : index
    %0 = vector.load %arg0[%c0, %c0_0] : memref<1x17xf32, #tpu.memory_space<vmem>>, vector<1x17xf32>
    %c0_1 = arith.constant 0 : index
    %c0_2 = arith.constant 0 : index
    %1 = vector.load %arg1[%c0_1, %c0_2] : memref<17x128xf32, #tpu.memory_space<vmem>>, vector<17x128xf32>
    %cst = arith.constant dense<0.000000e+00> : vector<1x128xf32>
    %2 = tpu.matmul %0, %1, %cst {dimension_numbers = #tpu.dot_dimension_numbers<[1], [0], [0], [1], [0, 0, 1, 1], [], []>} : vector<1x17xf32>, vector<17x128xf32>, vector<1x128xf32> -> vector<1x128xf32>
    %3 = vector.extract_strided_slice %2 {offsets = [0, 0], sizes = [1, 64], strides = [1, 1]} : vector<1x128xf32> to vector<1x64xf32>
    %4 = arith.negf %3 : vector<1x64xf32>
    %5 = math.exp %4 : vector<1x64xf32>
    %cst_3 = arith.constant 1.000000e+00 : f32
    %6 = vector.broadcast %cst_3 : f32 to vector<1x64xf32>
    %7 = arith.addf %6, %5 : vector<1x64xf32>
    %8 = arith.divf %6, %7 : vector<1x64xf32>
    %9 = vector.extract_strided_slice %2 {offsets = [0, 64], sizes = [1, 64], strides = [1, 1]} : vector<1x128xf32> to vector<1x64xf32>
    %10 = math.tanh %9 : vector<1x64xf32>
    %11 = arith.mulf %8, %10 : vector<1x64xf32>
    %c0_4 = arith.constant 0 : index
    %c0_5 = arith.constant 0 : index
    %12 = vector.load %arg2[%c0_4, %c0_5] : memref<65x16xf32, #tpu.memory_space<vmem>>, vector<64x16xf32>
    %c64 = arith.constant 64 : index
    %c0_6 = arith.constant 0 : index
    %13 = vector.load %arg2[%c64, %c0_6] : memref<65x16xf32, #tpu.memory_space<vmem>>, vector<1x16xf32>
    %cst_7 = arith.constant dense<0.000000e+00> : vector<1x16xf32>
    %14 = tpu.matmul %11, %12, %cst_7 {dimension_numbers = #tpu.dot_dimension_numbers<[1], [0], [0], [1], [0, 0, 1, 1], [], []>} : vector<1x64xf32>, vector<64x16xf32>, vector<1x16xf32> -> vector<1x16xf32>
    %15 = arith.addf %14, %13 : vector<1x16xf32>
    %cst_8 = arith.constant 0.000000e+00 : f32
    %16 = vector.broadcast %cst_8 : f32 to vector<1x16xf32>
    %17 = arith.cmpf ogt, %15, %16 : vector<1x16xf32>
    %cst_9 = arith.constant 0.00999999977 : f32
    %18 = vector.broadcast %cst_9 : f32 to vector<1x16xf32>
    %19 = arith.mulf %18, %15 : vector<1x16xf32>
    %20 = arith.select %17, %15, %19 : vector<1x16xi1>, vector<1x16xf32>
    %c0_10 = arith.constant 0 : index
    %c0_11 = arith.constant 0 : index
    %21 = vector.load %arg3[%c0_10, %c0_11] : memref<1x16xf32, #tpu.memory_space<vmem>>, vector<1x16xf32>
    tpu.vector_store %arg3[%c0_10, %c0_11], %20 {strides = array<i32>} : memref<1x16xf32, #tpu.memory_space<vmem>>, vector<1x16xf32>,
    return
  }
}

</mosaic_0001>

<llo_original>
// kernel: tpu_custom_call.1
$region0: #{tpu_custom_call.1}
  #allocation0 [shape = 'u32[]', space=smem, size = 0x4, offset = 0x4, fixed_abs, tag = 'smem constant byte address 0x4 - core index']
  #allocation1 [shape = 'u32[144,128]{1,0:T(1,128)}', space=vmem, size = 0x12000, scoped, tag = 'internal scratch']
  %s0 = inlined_call_operand.vmem [shape: f32[1,17], index: 0, kind: input, shape index: {}]
  %s1 = inlined_call_operand.vmem [shape: f32[17,128], index: 1, kind: input, shape index: {}]
  %s2 = inlined_call_operand.vmem [shape: f32[65,16], index: 2, kind: input, shape index: {}]
  %s3 = inlined_call_operand.hbm [shape: f32[1,16], index: 3, kind: output, shape index: {}]
  %s4 = sld [smem:[#allocation0]]
  $region22: #{tpu_custom_call.1} parent=0
    _
  %s6 = ssub.s32 1, %s4
  %s7 = scalar_select 0, %s6, %s4
  $region1: #{tpu_custom_call.1} parent=0
    #allocation2 [shape = 'u8[512]{0}', space=vmem, size = 0x400, scoped, tag = 'output window, operand 0, single buffered']
    #allocation3 [shape = 's32[1]{0}', space=sflag, size = 0x4, scoped, tag = 'scoped memory for tpu_custom_call.1']
    %8 = vsyncpa [#allocation3], 0
    // Predicated region
    $region2: #{tpu_custom_call.1} parent=1 // pred_check
      _
    $region3: #{tpu_custom_call.1} parent=1 // pred_check_branch
      %10 = sbr.rel (0) target = $region5
    $region4: #{tpu_custom_call.1} parent=1 // pred_region
      _
    $region5: #{tpu_custom_call.1} parent=1 // pred_fallthru
      _
    // Predicated region
    $region6: #{tpu_custom_call.1} parent=1 // pred_check
      _
    $region7: #{tpu_custom_call.1} parent=1 // pred_check_branch
      %12 = sbr.rel (0) target = $region9
    $region8: #{tpu_custom_call.1} parent=1 // pred_region
      _
    $region9: #{tpu_custom_call.1} parent=1 // pred_fallthru
      _
    // Predicated region
    $region10: #{tpu_custom_call.1} parent=1 // pred_check
      _
    $region11: #{tpu_custom_call.1} parent=1 // pred_check_branch
      %14 = sbr.rel (0) target = $region13
    $region12: #{tpu_custom_call.1} parent=1 // pred_region
      _
    $region13: #{tpu_custom_call.1} parent=1 // pred_fallthru
      _
    %v15 = vld [vmem:[%s0] sm:$0x1]
    %v16 = vld [vmem:[%s1] sm:$0xff]
    %v17 = vld [vmem:[%s1 + $0x8] sm:$0xff]
    %v18 = vld [vmem:[%s1 + $0x10] sm:$0x1]
    %vm19 = vcmask 138240
    %v21 = vsel %vm19, %v15, 0
    %vm23 = vcmask 1040384
    %v25 = vsel %vm23, %v18, 0
    %27 = vmatprep.subr.mxu0 0.0
    %28 = vmatpush1.msra.mxu0 0.0
    %29 = vmatprep.subr.mxu0 0.0
    %30 = vmatpush1.msra.mxu0 0.0
    %31 = vmatprep.subr.mxu0 0.0
    %32 = vmatpush1.msra.mxu0 0.0
    %33 = vmatprep.subr.mxu0 0.0
    %34 = vmatpush1.msra.mxu0 0.0
    %35 = vmatprep.subr.mxu0 0.0
    %36 = vmatpush1.msra.mxu0 0.0
    %37 = vmatprep.subr.mxu0 0.0
    %38 = vmatpush1.msra.mxu0 0.0
    %39 = vmatprep.subr.mxu0 0.0
    %40 = vmatpush1.msra.mxu0 0.0
    %41 = vmatprep.subr.mxu0 0.0
    %42 = vmatpush1.msra.mxu0 0.0
    %43 = vmatprep.subr.mxu0 0.0
    %44 = vmatpush1.msra.mxu0 0.0
    %45 = vmatprep.subr.mxu0 0.0
    %46 = vmatpush1.msra.mxu0 0.0
    %47 = vmatprep.subr.mxu0 0.0
    %48 = vmatpush1.msra.mxu0 0.0
    %49 = vmatprep.subr.mxu0 0.0
    %50 = vmatpush1.msra.mxu0 0.0
    %51 = vmatprep.subr.mxu0 0.0
    %52 = vmatpush1.msra.mxu0 0.0
    %53 = vmatprep.subr.mxu0 0.0
    %54 = vmatpush1.msra.mxu0 %v25
    %55 = vmatprep.subr.mxu0 0.0
    %56 = vmatpush1.msra.mxu0 %v17
    %57 = vmatprep.subr.mxu0 0.0
    %58 = vmatpush1.msra.mxu0 %v16
    %59 = vmatprep.subr.mxu0 0.0
    %60 = vmatpush2.msra.mxu0 0.0
    %61 = vmatprep.subr.mxu0 0.0
    %62 = vmatpush2.msra.mxu0 0.0
    %63 = vmatprep.subr.mxu0 0.0
    %64 = vmatpush2.msra.mxu0 0.0
    %65 = vmatprep.subr.mxu0 0.0
    %66 = vmatpush2.msra.mxu0 0.0
    %67 = vmatprep.subr.mxu0 0.0
    %68 = vmatpush2.msra.mxu0 0.0
    %69 = vmatprep.subr.mxu0 0.0
    %70 = vmatpush2.msra.mxu0 0.0
    %71 = vmatprep.subr.mxu0 0.0
    %72 = vmatpush2.msra.mxu0 0.0
    %73 = vmatprep.subr.mxu0 0.0
    %74 = vmatpush2.msra.mxu0 0.0
    %75 = vmatprep.subr.mxu0 0.0
    %76 = vmatpush2.msra.mxu0 0.0
    %77 = vmatprep.subr.mxu0 0.0
    %78 = vmatpush2.msra.mxu0 0.0
    %79 = vmatprep.subr.mxu0 0.0
    %80 = vmatpush2.msra.mxu0 0.0
    %81 = vmatprep.subr.mxu0 0.0
    %82 = vmatpush2.msra.mxu0 0.0
    %83 = vmatprep.subr.mxu0 0.0
    %84 = vmatpush2.msra.mxu0 0.0
    %85 = vmatprep.subr.mxu0 0.0
    %86 = vmatpush2.msra.mxu0 0.0
    %87 = vmatprep.subr.mxu0 0.0
    %88 = vmatpush2.msra.mxu0 0.0
    %89 = vmatprep.subr.mxu0 0.0
    %90 = vmatpush2.msra.mxu0 0.0
    %91 = vmatprep.mubr.f32.mxu0 0.0
    %92 = vmatmul.mubr.f32.gmra.mxu0 %v21
    %v93 = vpop.f32.mrf.mxu0
    %v94 = vadd.f32 0.0, %v93
    %v95 = vpop.f32.mrf.mxu0
    %96 = vdwg.mxu0
    %v97 = vxor.u32 %v94, 2147483648
    %v98 = vmul.f32 %v97, 1.442695
    %v99 = vpow.pop %v98
    %v100 = vadd.f32 %v99, 1.0
    %v101 = vrcp.pop %v100
    %v102 = vmul.f32 1.0, %v101
    %v103 = vtanh.pop %v94
    %105 = vrot.lane.b32.xlu0 %v103, 64
    %v106 = vpop.permute.xlu0 %105
    %v108 = vmul.f32 %v102, %v106
    %v109 = vld [vmem:[%s2] sm:$0xff]
    %v110 = vld [vmem:[%s2 + $0x8] sm:$0xff]
    %v111 = vld [vmem:[%s2 + $0x10] sm:$0xff]
    %v112 = vld [vmem:[%s2 + $0x18] sm:$0xff]
    %v113 = vld [vmem:[%s2 + $0x20] sm:$0xff]
    %v114 = vld [vmem:[%s2 + $0x28] sm:$0xff]
    %v115 = vld [vmem:[%s2 + $0x30] sm:$0xff]
    %v116 = vld [vmem:[%s2 + $0x38] sm:$0xff]
    %v117 = vld [vmem:[%s2 + $0x40] sm:$0x1]
    %vm118 = vcmask 523264
    %v120 = vsel %vm118, %v108, 0
    %122 = vmatprep.subr.mxu0 0.0
    %123 = vmatpush1.msra.mxu0 0.0
    %124 = vmatprep.subr.mxu0 0.0
    %125 = vmatpush1.msra.mxu0 0.0
    %126 = vmatprep.subr.mxu0 0.0
    %127 = vmatpush1.msra.mxu0 0.0
    %128 = vmatprep.subr.mxu0 0.0
    %129 = vmatpush1.msra.mxu0 0.0
    %130 = vmatprep.subr.mxu0 0.0
    %131 = vmatpush1.msra.mxu0 0.0
    %132 = vmatprep.subr.mxu0 0.0
    %133 = vmatpush1.msra.mxu0 0.0
    %134 = vmatprep.subr.mxu0 0.0
    %135 = vmatpush1.msra.mxu0 0.0
    %136 = vmatprep.subr.mxu0 0.0
    %137 = vmatpush1.msra.mxu0 0.0
    %138 = vmatprep.subr.mxu0 0.0
    %139 = vmatpush1.msra.mxu0 %v116
    %140 = vmatprep.subr.mxu0 0.0
    %141 = vmatpush1.msra.mxu0 %v115
    %142 = vmatprep.subr.mxu0 0.0
    %143 = vmatpush1.msra.mxu0 %v114
    %144 = vmatprep.subr.mxu0 0.0
    %145 = vmatpush1.msra.mxu0 %v113
    %146 = vmatprep.subr.mxu0 0.0
    %147 = vmatpush1.msra.mxu0 %v112
    %148 = vmatprep.subr.mxu0 0.0
    %149 = vmatpush1.msra.mxu0 %v111
    %150 = vmatprep.subr.mxu0 0.0
    %151 = vmatpush1.msra.mxu0 %v110
    %152 = vmatprep.subr.mxu0 0.0
    %153 = vmatpush1.msra.mxu0 %v109
    %154 = vmatprep.subr.mxu0 0.0
    %155 = vmatpush2.msra.mxu0 0.0
    %156 = vmatprep.subr.mxu0 0.0
    %157 = vmatpush2.msra.mxu0 0.0
    %158 = vmatprep.subr.mxu0 0.0
    %159 = vmatpush2.msra.mxu0 0.0
    %160 = vmatprep.subr.mxu0 0.0
    %161 = vmatpush2.msra.mxu0 0.0
    %162 = vmatprep.subr.mxu0 0.0
    %163 = vmatpush2.msra.mxu0 0.0
    %164 = vmatprep.subr.mxu0 0.0
    %165 = vmatpush2.msra.mxu0 0.0
    %166 = vmatprep.subr.mxu0 0.0
    %167 = vmatpush2.msra.mxu0 0.0
    %168 = vmatprep.subr.mxu0 0.0
    %169 = vmatpush2.msra.mxu0 0.0
    %170 = vmatprep.subr.mxu0 0.0
    %171 = vmatpush2.msra.mxu0 0.0
    %172 = vmatprep.subr.mxu0 0.0
    %173 = vmatpush2.msra.mxu0 0.0
    %174 = vmatprep.subr.mxu0 0.0
    %175 = vmatpush2.msra.mxu0 0.0
    %176 = vmatprep.subr.mxu0 0.0
    %177 = vmatpush2.msra.mxu0 0.0
    %178 = vmatprep.subr.mxu0 0.0
    %179 = vmatpush2.msra.mxu0 0.0
    %180 = vmatprep.subr.mxu0 0.0
    %181 = vmatpush2.msra.mxu0 0.0
    %182 = vmatprep.subr.mxu0 0.0
    %183 = vmatpush2.msra.mxu0 0.0
    %184 = vmatprep.subr.mxu0 0.0
    %185 = vmatpush2.msra.mxu0 0.0
    %186 = vmatprep.mubr.f32.mxu0 0.0
    %187 = vmatmul.mubr.f32.gmra.mxu0 %v120
    %v188 = vpop.f32.mrf.mxu0
    %v189 = vadd.f32 %v117, %v188
    %v190 = vpop.f32.mrf.mxu0
    %191 = vdwg.mxu0
    %vm192 = vcmp.gt.f32.partialorder %v189, 0.0
    %v193 = vmul.f32 %v189, 0.01
    %v194 = vsel %vm192, %v189, %v193
    %vm195 = vcmask 122880
    %196 = vst.msk [vmem:[#allocation2] sm:$0x1] %vm195, %v194
    // Predicated region
    $region14: #{tpu_custom_call.1} parent=1 // pred_check
      _
    $region15: #{tpu_custom_call.1} parent=1 // pred_check_branch
      %198 = sbr.rel (0) target = $region17
    $region16: #{tpu_custom_call.1} parent=1 // pred_region
      %s200 = ssub.s32 16, 16
      %201 = vsyncadd [#allocation3], %s200
      %s203 = sshll.u32 [#allocation2], 4
      %s204 = int_to_ptr.vmem [resolvable:$true] %s203
      %206 = dma.vmem_to_hbm [thread:$0]  %s204, 16, %s3, [#allocation3]
    $region17: #{tpu_custom_call.1} parent=1 // pred_fallthru
      _
    // Predicated region
    $region18: #{tpu_custom_call.1} parent=1 // pred_check
      _
    $region19: #{tpu_custom_call.1} parent=1 // pred_check_branch
      %208 = sbr.rel (0) target = $region21
    $region20: #{tpu_custom_call.1} parent=1 // pred_region
      %209 = dma.done [#allocation3], 16
    $region21: #{tpu_custom_call.1} parent=1 // pred_fallthru
      _
    %210 = vsyncpa [#allocation3], 1

</llo_original>
